<compile_context>
chip_gen: v7x
topology: tpu7x:2x2x1
jax: 0.10.0
libtpu: 0.0.40
codegen_flags: <defaults>
</compile_context>

<pallas_src>
import functools

import jax
import jax.numpy as jnp
import numpy as np
from jax.experimental import pallas as pl
from jax.experimental.pallas import tpu as pltpu

_EPS = 1e-5


def _round_up(a, m):
    return (a + m - 1) // m * m


def _pad2(a, rows, cols):
    r, c = a.shape
    return jnp.pad(a, ((0, rows - r), (0, cols - c)))


def _vmem_limit_bytes():
    """Generation-aware scoped-VMEM limit: ~3/4 of physical VMEM per core
    (v5e/v6e: 128 MiB -> 96 MiB, v7x: 64 MiB -> 48 MiB; 48 MiB fallback)."""
    cap = None
    try:
        cap = getattr(pltpu.get_tpu_info(), "vmem_capacity_bytes", None)
    except Exception:  # not on TPU / API shape changed -> conservative default
        cap = None
    if not cap:
        cap = 64 * 1024 * 1024
    return min(int(cap) * 3 // 4, 100 * 1024 * 1024)


# ----------------------------- fused kernel -------------------------------- #

def _fused_kernel(x_ref, w1_ref, g_ref, beta_ref, w2_ref, b2_ref, o_ref,
                  h_ref, sum_ref, ssq_ref, *, n_valid, eps):
    """Single-pass MLP: accumulate BN stats over row tiles while stashing
    h_pre = x@W1 in VMEM; at the last tile finalize stats, fold BN(+bias) into
    scale/shift, ReLU and run the second matmul from VMEM."""
    i = pl.program_id(0)
    tile_p = x_ref.shape[0]

    @pl.when(i == 0)
    def _init():
        sum_ref[...] = jnp.zeros_like(sum_ref)
        ssq_ref[...] = jnp.zeros_like(ssq_ref)

    # b1 cancels exactly under training-mode BatchNorm (it is a per-channel shift
    # removed by mean subtraction), so stats use h_pre = x@W1 only.  Zero-padded
    # batch rows produce exactly-zero h_pre rows -> no masking needed.
    h = jnp.dot(x_ref[...], w1_ref[...], preferred_element_type=jnp.float32)
    sum_ref[...] += jnp.sum(h, axis=0, keepdims=True)
    ssq_ref[...] += jnp.sum(h * h, axis=0, keepdims=True)

    off = pl.multiple_of(i * tile_p, tile_p)
    h_ref[pl.ds(off, tile_p), :] = h

    @pl.when(i == pl.num_programs(0) - 1)
    def _finalize():
        inv_n = 1.0 / n_valid
        mean = sum_ref[...] * inv_n
        var = ssq_ref[...] * inv_n - mean * mean          # biased variance
        scale = g_ref[...] * jax.lax.rsqrt(var + eps)
        shift = beta_ref[...] - mean * scale
        hn = jnp.maximum(h_ref[...] * scale + shift, 0.0)
        y = jnp.dot(hn.astype(w2_ref.dtype), w2_ref[...],
                    preferred_element_type=jnp.float32) + b2_ref[...]
        o_ref[...] = y.astype(o_ref.dtype)


# -------------------------- two-phase kernels ------------------------------ #

def _stats_kernel(x_ref, w1_ref, sum_ref, ssq_ref):
    """Phase 1: per-channel partial sum / sum^2 of h_pre = x@W1.  The leading
    ("parallel") grid axis gives each core its own partial-sum row; the trailing
    ("arbitrary") axis is the row-tile reduction."""
    i = pl.program_id(1)

    @pl.when(i == 0)
    def _init():
        sum_ref[...] = jnp.zeros_like(sum_ref)
        ssq_ref[...] = jnp.zeros_like(ssq_ref)

    h = jnp.dot(x_ref[...], w1_ref[...], preferred_element_type=jnp.float32)
    sum_ref[...] += jnp.sum(h, axis=0, keepdims=True)
    ssq_ref[...] += jnp.sum(h * h, axis=0, keepdims=True)


def _apply_kernel(x_ref, w1_ref, scale_ref, shift_ref, w2_ref, b2_ref, o_ref):
    """Phase 2: recompute h_pre, apply folded BN scale/shift + ReLU, second matmul."""
    h = jnp.dot(x_ref[...], w1_ref[...], preferred_element_type=jnp.float32)
    h = jnp.maximum(h * scale_ref[...] + shift_ref[...], 0.0)
    y = jnp.dot(h.astype(w2_ref.dtype), w2_ref[...],
                preferred_element_type=jnp.float32) + b2_ref[...]
    o_ref[...] = y.astype(o_ref.dtype)


# ------------------------------ wrapper ------------------------------------ #

def mlp_forward(x, params, *, tile_rows=512, eps=_EPS, fused=None):
    """MLP forward: Linear(chan, inner) -> BN1d(train) -> ReLU -> Linear(inner, out).

    `fused=None` auto-selects: single fused pallas_call when the whole h=(Bp,Hp)
    scratch + output fit comfortably in VMEM, otherwise the two-phase pipeline.
    """
    B, K = x.shape
    H = params["w1"].shape[1]
    N = params["w2"].shape[1]

    vmem_limit = _vmem_limit_bytes()

    # Lane-dense padding of feature dims; bf16 row tiles rounded to 16 (sublane pack).
    Kp = _round_up(K, 128)
    Hp = _round_up(H, 128)
    Np = _round_up(N, 128)
    tile_p = min(_round_up(tile_rows, 16), _round_up(B, 16))
    nt = pl.cdiv(B, tile_p)

    if fused is None:
        resident = (nt * tile_p * Hp * 4            # h scratch
                    + 2 * nt * tile_p * Np * 4      # output block (double-buffer slack)
                    + 2 * (Kp * Hp + Hp * Np) * 2   # double-buffered bf16 weights
                    + 2 * tile_p * Kp * 2           # double-buffered x tile
                    + 16 * Hp * 4 + 4 * Np * 4)     # small vectors / accumulators
        fused = resident <= vmem_limit // 2

    # bf16 for MXU operands; f32 for everything touched by the VPU.
    # NOTE: params["b1"] is intentionally unused by the kernels: a Linear bias
    # feeding a training-mode BatchNorm cancels exactly in the forward output.
    w1 = _pad2(params["w1"], Kp, Hp).astype(jnp.bfloat16)
    w2 = _pad2(params["w2"], Hp, Np).astype(jnp.bfloat16)
    g = _pad2(params["gamma"].reshape(1, -1), 1, Hp).astype(jnp.float32)
    be = _pad2(params["beta"].reshape(1, -1), 1, Hp).astype(jnp.float32)
    b2 = _pad2(params["b2"].reshape(1, -1), 1, Np).astype(jnp.float32)

    if fused:
        # ---- fused single pallas_call (small/medium batch) ----
        Bp = nt * tile_p
        xb = _pad2(x, Bp, Kp).astype(jnp.bfloat16)
        cost = pl.CostEstimate(
            flops=2 * Bp * Kp * Hp + 2 * Bp * Hp * Np,
            transcendentals=Hp,  # one rsqrt over the (1, Hp) variance row
            bytes_accessed=(xb.size * 2 + w1.size * 2 + w2.size * 2
                            + (g.size + be.size + b2.size) * 4 + Bp * Np * 4))
        out = pl.pallas_call(
            functools.partial(_fused_kernel, n_valid=B, eps=eps),
            grid=(nt,),
            in_specs=[pl.BlockSpec((tile_p, Kp), lambda i: (i, 0)),
                      pl.BlockSpec((Kp, Hp), lambda i: (0, 0)),
                      pl.BlockSpec((1, Hp), lambda i: (0, 0)),
                      pl.BlockSpec((1, Hp), lambda i: (0, 0)),
                      pl.BlockSpec((Hp, Np), lambda i: (0, 0)),
                      pl.BlockSpec((1, Np), lambda i: (0, 0))],
            out_specs=pl.BlockSpec((Bp, Np), lambda i: (0, 0)),
            out_shape=jax.ShapeDtypeStruct((Bp, Np), jnp.float32),
            scratch_shapes=[pltpu.VMEM((Bp, Hp), jnp.float32),
                            pltpu.VMEM((1, Hp), jnp.float32),
                            pltpu.VMEM((1, Hp), jnp.float32)],
            compiler_params=pltpu.CompilerParams(
                dimension_semantics=("arbitrary",),   # resident stats/output accumulators
                vmem_limit_bytes=vmem_limit),
            cost_estimate=cost,
        )(xb, w1, g, be, w2, b2)
        return out[:B, :N]

    # ---- two-phase fallback (large batch) ----
    # Phase 1: split the row-tile reduction into n_split independent partial sums
    # (leading "parallel" axis -> megacore-sharded on v7x), combine in XLA.
    n_split = 2 if nt >= 2 else 1
    nt_per = pl.cdiv(nt, n_split)
    nt_total = n_split * nt_per
    Bp = nt_total * tile_p
    xb = _pad2(x, Bp, Kp).astype(jnp.bfloat16)

    stats_cost = pl.CostEstimate(
        flops=2 * Bp * Kp * Hp, transcendentals=0,
        bytes_accessed=xb.size * 2 + w1.size * 2 + 2 * n_split * Hp * 4)
    sums, ssqs = pl.pallas_call(
        _stats_kernel,
        grid=(n_split, nt_per),
        in_specs=[pl.BlockSpec((tile_p, Kp), lambda c, i: (c * nt_per + i, 0)),
                  pl.BlockSpec((Kp, Hp), lambda c, i: (0, 0))],
        out_specs=(pl.BlockSpec((1, Hp), lambda c, i: (c, 0)),
                   pl.BlockSpec((1, Hp), lambda c, i: (c, 0))),
        out_shape=(jax.ShapeDtypeStruct((n_split, Hp), jnp.float32),
                   jax.ShapeDtypeStruct((n_split, Hp), jnp.float32)),
        compiler_params=pltpu.CompilerParams(
            dimension_semantics=("parallel", "arbitrary"),
            vmem_limit_bytes=vmem_limit),
        cost_estimate=stats_cost,
    )(xb, w1)

    # Tiny XLA op: fold BN (+ the cancelled Linear bias) into scale/shift.
    mean = jnp.sum(sums, axis=0, keepdims=True) / B
    var = jnp.sum(ssqs, axis=0, keepdims=True) / B - mean * mean
    scale = g * jax.lax.rsqrt(var + eps)
    shift = be - mean * scale

    apply_cost = pl.CostEstimate(
        flops=2 * Bp * Kp * Hp + 2 * Bp * Hp * Np, transcendentals=0,
        bytes_accessed=(xb.size * 2 + w1.size * 2 + w2.size * 2
                        + (scale.size + shift.size + b2.size) * 4 + Bp * Np * 4))
    out = pl.pallas_call(
        _apply_kernel,
        grid=(nt_total,),
        in_specs=[pl.BlockSpec((tile_p, Kp), lambda i: (i, 0)),
                  pl.BlockSpec((Kp, Hp), lambda i: (0, 0)),
                  pl.BlockSpec((1, Hp), lambda i: (0, 0)),
                  pl.BlockSpec((1, Hp), lambda i: (0, 0)),
                  pl.BlockSpec((Hp, Np), lambda i: (0, 0)),
                  pl.BlockSpec((1, Np), lambda i: (0, 0))],
        out_specs=pl.BlockSpec((tile_p, Np), lambda i: (i, 0)),
        out_shape=jax.ShapeDtypeStruct((Bp, Np), jnp.float32),
        compiler_params=pltpu.CompilerParams(
            dimension_semantics=("parallel",),       # megacore-shard row tiles
            vmem_limit_bytes=vmem_limit),
        cost_estimate=apply_cost,
    )(xb, w1, scale, shift, w2, b2)
    return out[:B, :N]


# ------------------------- pure-JAX reference ------------------------------ #

def _reference(x, p, eps=_EPS):
    # Same bf16 quantization of matmul operands as the kernel, f32 elsewhere.
    q = lambda a: a.astype(jnp.bfloat16).astype(jnp.float32)
    h = q(x) @ q(p["w1"]) + p["b1"]
    mean = h.mean(axis=0, keepdims=True)
    var = ((h - mean) ** 2).mean(axis=0, keepdims=True)
    h = (h - mean) * jax.lax.rsqrt(var + eps) * p["gamma"] + p["beta"]
    h = jnp.maximum(h, 0.0)
    return q(h) @ q(p["w2"]) + p["b2"]


# ------------------------------- main -------------------------------------- #

if __name__ == "__main__":
    # Small shapes consistent with MLP(chan, chan_out, inner_dim); deliberately
    # non-multiples of 128 and a non-multiple-of-tile batch to exercise padding,
    # lane-dense re-padding and the zero-contribution of padded rows to BN stats.
    B, CHAN, INNER, OUT = 90, 48, 96, 40

    key = jax.random.PRNGKey(0)
    ks = jax.random.split(key, 8)
    params = {
        "w1": 0.15 * jax.random.normal(ks[0], (CHAN, INNER), jnp.float32),
        "b1": 0.10 * jax.random.normal(ks[1], (INNER,), jnp.float32),
        "gamma": 1.0 + 0.05 * jax.random.normal(ks[2], (INNER,), jnp.float32),
        "beta": 0.05 * jax.random.normal(ks[3], (INNER,), jnp.float32),
        "w2": 0.15 * jax.random.normal(ks[4], (INNER, OUT), jnp.float32),
        "b2": 0.10 * jax.random.normal(ks[5], (OUT,), jnp.float32),
    }
    x = jax.random.normal(ks[6], (B, CHAN), jnp.float32)
    y_ref = np.asarray(_reference(x, params))

    # 1) default config: auto-selects the fused single-kernel path (one row tile).
    y = jax.block_until_ready(jax.jit(mlp_forward)(x, params))
    assert y.shape == (B, OUT), y.shape
    np.testing.assert_allclose(np.asarray(y), y_ref, rtol=1e-2, atol=1e-2)

    # 2) fused path with several row tiles (exercises the VMEM h-scratch accumulation).
    y = jax.block_until_ready(
        jax.jit(functools.partial(mlp_forward, tile_rows=32, fused=True))(x, params))
    np.testing.assert_allclose(np.asarray(y), y_ref, rtol=1e-2, atol=1e-2)

    # 3) two-phase large-batch fallback: split stats (megacore on v7x) + parallel apply.
    y = jax.block_until_ready(
        jax.jit(functools.partial(mlp_forward, tile_rows=32, fused=False))(x, params))
    np.testing.assert_allclose(np.asarray(y), y_ref, rtol=1e-2, atol=1e-2)

    print("KERNEL_OK")
</pallas_src>

<mosaic_0001>
module attributes {stable_mosaic.version = 11 : i64} {
  func.func @_fused_kernel(%arg0: i32, %arg1: memref<96x128xbf16, #tpu.memory_space<vmem>>, %arg2: memref<128x128xbf16, #tpu.memory_space<vmem>>, %arg3: memref<1x128xf32, #tpu.memory_space<vmem>>, %arg4: memref<1x128xf32, #tpu.memory_space<vmem>>, %arg5: memref<128x128xbf16, #tpu.memory_space<vmem>>, %arg6: memref<1x128xf32, #tpu.memory_space<vmem>>, %arg7: memref<96x128xf32, #tpu.memory_space<vmem>>, %arg8: memref<96x128xf32, #tpu.memory_space<vmem>>, %arg9: memref<1x128xf32, #tpu.memory_space<vmem>>, %arg10: memref<1x128xf32, #tpu.memory_space<vmem>>) attributes {dimension_semantics = [#tpu.dimension_semantics<arbitrary>], iteration_bounds = array<i64: 1>, scalar_prefetch = 0 : i64, scratch_operands = 3 : i64, tpu.core_type = #tpu.core_type<tc>, window_params = [{transform_indices = @transform_0, window_bounds = array<i64: 96, 128>}, {pipeline_mode = #tpu.pipeline_mode<synchronous>, transform_indices = @transform_1, window_bounds = array<i64: 128, 128>}, {pipeline_mode = #tpu.pipeline_mode<synchronous>, transform_indices = @transform_2, window_bounds = array<i64: 1, 128>}, {pipeline_mode = #tpu.pipeline_mode<synchronous>, transform_indices = @transform_3, window_bounds = array<i64: 1, 128>}, {pipeline_mode = #tpu.pipeline_mode<synchronous>, transform_indices = @transform_4, window_bounds = array<i64: 128, 128>}, {pipeline_mode = #tpu.pipeline_mode<synchronous>, transform_indices = @transform_5, window_bounds = array<i64: 1, 128>}, {pipeline_mode = #tpu.pipeline_mode<synchronous>, transform_indices = @transform_6, window_bounds = array<i64: 96, 128>}]} {
    %c0_i32 = arith.constant 0 : i32
    %0 = arith.cmpi eq, %arg0, %c0_i32 : i32
    %1 = arith.extui %0 : i1 to i32
    %c0_i32_0 = arith.constant 0 : i32
    %2 = arith.cmpi ne, %1, %c0_i32_0 : i32
    scf.if %2 {
      %cst_17 = arith.constant 0.000000e+00 : f32
      %24 = vector.broadcast %cst_17 : f32 to vector<1x128xf32>
      %c0_18 = arith.constant 0 : index
      %c0_19 = arith.constant 0 : index
      %25 = vector.load %arg9[%c0_18, %c0_19] : memref<1x128xf32, #tpu.memory_space<vmem>>, vector<1x128xf32>
      tpu.vector_store %arg9[%c0_18, %c0_19], %24 {strides = array<i32>} : memref<1x128xf32, #tpu.memory_space<vmem>>, vector<1x128xf32>,
      %cst_20 = arith.constant 0.000000e+00 : f32
      %26 = vector.broadcast %cst_20 : f32 to vector<1x128xf32>
      %c0_21 = arith.constant 0 : index
      %c0_22 = arith.constant 0 : index
      %27 = vector.load %arg10[%c0_21, %c0_22] : memref<1x128xf32, #tpu.memory_space<vmem>>, vector<1x128xf32>
      tpu.vector_store %arg10[%c0_21, %c0_22], %26 {strides = array<i32>} : memref<1x128xf32, #tpu.memory_space<vmem>>, vector<1x128xf32>,
    } else {
    }
    %c0 = arith.constant 0 : index
    %c0_1 = arith.constant 0 : index
    %3 = vector.load %arg1[%c0, %c0_1] : memref<96x128xbf16, #tpu.memory_space<vmem>>, vector<96x128xbf16>
    %c0_2 = arith.constant 0 : index
    %c0_3 = arith.constant 0 : index
    %4 = vector.load %arg2[%c0_2, %c0_3] : memref<128x128xbf16, #tpu.memory_space<vmem>>, vector<128x128xbf16>
    %cst = arith.constant dense<0.000000e+00> : vector<96x128xf32>
    %5 = tpu.matmul %3, %4, %cst {dimension_numbers = #tpu.dot_dimension_numbers<[1], [0], [0], [1], [0, 0, 1, 1], [], []>} : vector<96x128xbf16>, vector<128x128xbf16>, vector<96x128xf32> -> vector<96x128xf32>
    %c0_4 = arith.constant 0 : index
    %c0_5 = arith.constant 0 : index
    %6 = vector.load %arg9[%c0_4, %c0_5] : memref<1x128xf32, #tpu.memory_space<vmem>>, vector<1x128xf32>
    %cst_6 = arith.constant dense<0.000000e+00> : vector<128xf32>
    %7 = vector.multi_reduction <add>, %5, %cst_6 [0] : vector<96x128xf32> to vector<128xf32>
    %8 = vector.shape_cast %7 : vector<128xf32> to vector<1x128xf32>
    %9 = arith.addf %6, %8 : vector<1x128xf32>
    %c0_7 = arith.constant 0 : index
    %c0_8 = arith.constant 0 : index
    %10 = vector.load %arg9[%c0_7, %c0_8] : memref<1x128xf32, #tpu.memory_space<vmem>>, vector<1x128xf32>
    tpu.vector_store %arg9[%c0_7, %c0_8], %9 {strides = array<i32>} : memref<1x128xf32, #tpu.memory_space<vmem>>, vector<1x128xf32>,
    %c0_9 = arith.constant 0 : index
    %c0_10 = arith.constant 0 : index
    %11 = vector.load %arg10[%c0_9, %c0_10] : memref<1x128xf32, #tpu.memory_space<vmem>>, vector<1x128xf32>
    %12 = arith.mulf %5, %5 : vector<96x128xf32>
    %cst_11 = arith.constant dense<0.000000e+00> : vector<128xf32>
    %13 = vector.multi_reduction <add>, %12, %cst_11 [0] : vector<96x128xf32> to vector<128xf32>
    %14 = vector.shape_cast %13 : vector<128xf32> to vector<1x128xf32>
    %15 = arith.addf %11, %14 : vector<1x128xf32>
    %c0_12 = arith.constant 0 : index
    %c0_13 = arith.constant 0 : index
    %16 = vector.load %arg10[%c0_12, %c0_13] : memref<1x128xf32, #tpu.memory_space<vmem>>, vector<1x128xf32>
    tpu.vector_store %arg10[%c0_12, %c0_13], %15 {strides = array<i32>} : memref<1x128xf32, #tpu.memory_space<vmem>>, vector<1x128xf32>,
    %c96_i32 = arith.constant 96 : i32
    %17 = arith.muli %arg0, %c96_i32 : i32
    %18 = tpu.assume_multiple %17, 96 : i32
    %19 = arith.index_cast %18 : i32 to index
    %c0_14 = arith.constant 0 : index
    %20 = vector.load %arg8[%19, %c0_14] : memref<96x128xf32, #tpu.memory_space<vmem>>, vector<96x128xf32>
    tpu.vector_store %arg8[%19, %c0_14], %5 {strides = array<i32>} : memref<96x128xf32, #tpu.memory_space<vmem>>, vector<96x128xf32>,
    %c0_i32_15 = arith.constant 0 : i32
    %21 = arith.cmpi eq, %arg0, %c0_i32_15 : i32
    %22 = arith.extui %21 : i1 to i32
    %c0_i32_16 = arith.constant 0 : i32
    %23 = arith.cmpi ne, %22, %c0_i32_16 : i32
    scf.if %23 {
      %c0_17 = arith.constant 0 : index
      %c0_18 = arith.constant 0 : index
      %24 = vector.load %arg9[%c0_17, %c0_18] : memref<1x128xf32, #tpu.memory_space<vmem>>, vector<1x128xf32>
      %cst_19 = arith.constant 0.0111111114 : f32
      %25 = vector.broadcast %cst_19 : f32 to vector<1x128xf32>
      %26 = arith.mulf %24, %25 : vector<1x128xf32>
      %c0_20 = arith.constant 0 : index
      %c0_21 = arith.constant 0 : index
      %27 = vector.load %arg10[%c0_20, %c0_21] : memref<1x128xf32, #tpu.memory_space<vmem>>, vector<1x128xf32>
      %cst_22 = arith.constant 0.0111111114 : f32
      %28 = vector.broadcast %cst_22 : f32 to vector<1x128xf32>
      %29 = arith.mulf %27, %28 : vector<1x128xf32>
      %30 = arith.mulf %26, %26 : vector<1x128xf32>
      %31 = arith.subf %29, %30 : vector<1x128xf32>
      %c0_23 = arith.constant 0 : index
      %c0_24 = arith.constant 0 : index
      %32 = vector.load %arg3[%c0_23, %c0_24] : memref<1x128xf32, #tpu.memory_space<vmem>>, vector<1x128xf32>
      %cst_25 = arith.constant 9.99999974E-6 : f32
      %33 = vector.broadcast %cst_25 : f32 to vector<1x128xf32>
      %34 = arith.addf %31, %33 : vector<1x128xf32>
      %35 = math.rsqrt %34 : vector<1x128xf32>
      %36 = arith.mulf %32, %35 : vector<1x128xf32>
      %c0_26 = arith.constant 0 : index
      %c0_27 = arith.constant 0 : index
      %37 = vector.load %arg4[%c0_26, %c0_27] : memref<1x128xf32, #tpu.memory_space<vmem>>, vector<1x128xf32>
      %38 = arith.mulf %26, %36 : vector<1x128xf32>
      %39 = arith.subf %37, %38 : vector<1x128xf32>
      %c0_28 = arith.constant 0 : index
      %c0_29 = arith.constant 0 : index
      %40 = vector.load %arg8[%c0_28, %c0_29] : memref<96x128xf32, #tpu.memory_space<vmem>>, vector<96x128xf32>
      %41 = vector.broadcast %36 : vector<1x128xf32> to vector<96x128xf32>
      %42 = arith.mulf %40, %41 : vector<96x128xf32>
      %43 = vector.broadcast %39 : vector<1x128xf32> to vector<96x128xf32>
      %44 = arith.addf %42, %43 : vector<96x128xf32>
      %cst_30 = arith.constant 0.000000e+00 : f32
      %45 = vector.broadcast %cst_30 : f32 to vector<96x128xf32>
      %46 = arith.maximumf %44, %45 : vector<96x128xf32>
      %47 = arith.truncf %46 : vector<96x128xf32> to vector<96x128xbf16>
      %c0_31 = arith.constant 0 : index
      %c0_32 = arith.constant 0 : index
      %48 = vector.load %arg5[%c0_31, %c0_32] : memref<128x128xbf16, #tpu.memory_space<vmem>>, vector<128x128xbf16>
      %cst_33 = arith.constant dense<0.000000e+00> : vector<96x128xf32>
      %49 = tpu.matmul %47, %48, %cst_33 {dimension_numbers = #tpu.dot_dimension_numbers<[1], [0], [0], [1], [0, 0, 1, 1], [], []>} : vector<96x128xbf16>, vector<128x128xbf16>, vector<96x128xf32> -> vector<96x128xf32>
      %c0_34 = arith.constant 0 : index
      %c0_35 = arith.constant 0 : index
      %50 = vector.load %arg6[%c0_34, %c0_35] : memref<1x128xf32, #tpu.memory_space<vmem>>, vector<1x128xf32>
      %51 = vector.broadcast %50 : vector<1x128xf32> to vector<96x128xf32>
      %52 = arith.addf %49, %51 : vector<96x128xf32>
      %c0_36 = arith.constant 0 : index
      %c0_37 = arith.constant 0 : index
      %53 = vector.load %arg7[%c0_36, %c0_37] : memref<96x128xf32, #tpu.memory_space<vmem>>, vector<96x128xf32>
      tpu.vector_store %arg7[%c0_36, %c0_37], %52 {strides = array<i32>} : memref<96x128xf32, #tpu.memory_space<vmem>>, vector<96x128xf32>,
    } else {
    }
    return
  }
  func.func @transform_0(%arg0: i32) -> (i32, i32) {
    %c0_i32 = arith.constant 0 : i32
    %c0_i32_0 = arith.constant 0 : i32
    return %arg0, %c0_i32 : i32, i32
  }
  func.func @transform_1(%arg0: i32) -> (i32, i32) {
    %c0_i32 = arith.constant 0 : i32
    %c0_i32_0 = arith.constant 0 : i32
    %c0_i32_1 = arith.constant 0 : i32
    return %c0_i32, %c0_i32_0 : i32, i32
  }
  func.func @transform_2(%arg0: i32) -> (i32, i32) {
    %c0_i32 = arith.constant 0 : i32
    %c0_i32_0 = arith.constant 0 : i32
    %c0_i32_1 = arith.constant 0 : i32
    return %c0_i32, %c0_i32_0 : i32, i32
  }
  func.func @transform_3(%arg0: i32) -> (i32, i32) {
    %c0_i32 = arith.constant 0 : i32
    %c0_i32_0 = arith.constant 0 : i32
    %c0_i32_1 = arith.constant 0 : i32
    return %c0_i32, %c0_i32_0 : i32, i32
  }
  func.func @transform_4(%arg0: i32) -> (i32, i32) {
    %c0_i32 = arith.constant 0 : i32
    %c0_i32_0 = arith.constant 0 : i32
    %c0_i32_1 = arith.constant 0 : i32
    return %c0_i32, %c0_i32_0 : i32, i32
  }
  func.func @transform_5(%arg0: i32) -> (i32, i32) {
    %c0_i32 = arith.constant 0 : i32
    %c0_i32_0 = arith.constant 0 : i32
    %c0_i32_1 = arith.constant 0 : i32
    return %c0_i32, %c0_i32_0 : i32, i32
  }
  func.func @transform_6(%arg0: i32) -> (i32, i32) {
    %c0_i32 = arith.constant 0 : i32
    %c0_i32_0 = arith.constant 0 : i32
    %c0_i32_1 = arith.constant 0 : i32
    return %c0_i32, %c0_i32_0 : i32, i32
  }
}

</mosaic_0001>

<llo_original>
// kernel: mlp_forward.1
$region0: #{mlp_forward.1}
  #allocation0 [shape = 'u32[]', space=smem, size = 0x4, offset = 0x4, fixed_abs, tag = 'smem constant byte address 0x4 - core index']
  #allocation1 [shape = 'u32[144,128]{1,0:T(1,128)}', space=vmem, size = 0x12000, scoped, tag = 'internal scratch']
  #allocation2 [shape = 'f32[96,128]{1,0:T(8,128)}', space=vmem, size = 0xc000, scoped, tag = 'scratch operand']
  #allocation3 [shape = 'f32[1,128]{1,0:T(1,128)}', space=vmem, size = 0x200, scoped, tag = 'scratch operand']
  #allocation4 [shape = 'f32[1,128]{1,0:T(1,128)}', space=vmem, size = 0x200, scoped, tag = 'scratch operand']
  %s0 = inlined_call_operand.vmem [shape: bf16[96,128], index: 0, kind: input, shape index: {}]
  %s1 = inlined_call_operand.vmem [shape: bf16[128,128], index: 1, kind: input, shape index: {}]
  %s2 = inlined_call_operand.vmem [shape: f32[1,128], index: 2, kind: input, shape index: {}]
  %s3 = inlined_call_operand.vmem [shape: f32[1,128], index: 3, kind: input, shape index: {}]
  %s4 = inlined_call_operand.vmem [shape: bf16[128,128], index: 4, kind: input, shape index: {}]
  %s5 = inlined_call_operand.vmem [shape: f32[1,128], index: 5, kind: input, shape index: {}]
  %s6 = inlined_call_operand.vmem [shape: f32[96,128], index: 6, kind: output, shape index: {}]
  %s7 = sld [smem:[#allocation0]]
  $region42: #{mlp_forward.1} parent=0
    _
  %s9 = ssub.s32 1, %s7
  %s10 = scalar_select 0, %s9, %s7
  // Predicated region
  $region2: #{mlp_forward.1} parent=0 // pred_check
    _
  $region3: #{mlp_forward.1} parent=0 // pred_check_branch
    %12 = sbr.rel (0) target = $region5
  $region4: #{mlp_forward.1} parent=0 // pred_region
    _
  $region5: #{mlp_forward.1} parent=0 // pred_fallthru
    _
  // Predicated region
  $region6: #{mlp_forward.1} parent=0 // pred_check
    _
  $region7: #{mlp_forward.1} parent=0 // pred_check_branch
    %14 = sbr.rel (0) target = $region9
  $region8: #{mlp_forward.1} parent=0 // pred_region
    _
  $region9: #{mlp_forward.1} parent=0 // pred_fallthru
    _
  // Predicated region
  $region10: #{mlp_forward.1} parent=0 // pred_check
    _
  $region11: #{mlp_forward.1} parent=0 // pred_check_branch
    %16 = sbr.rel (0) target = $region13
  $region12: #{mlp_forward.1} parent=0 // pred_region
    _
  $region13: #{mlp_forward.1} parent=0 // pred_fallthru
    _
  // Predicated region
  $region14: #{mlp_forward.1} parent=0 // pred_check
    _
  $region15: #{mlp_forward.1} parent=0 // pred_check_branch
    %18 = sbr.rel (0) target = $region17
  $region16: #{mlp_forward.1} parent=0 // pred_region
    _
  $region17: #{mlp_forward.1} parent=0 // pred_fallthru
    _
  // Predicated region
  $region18: #{mlp_forward.1} parent=0 // pred_check
    _
  $region19: #{mlp_forward.1} parent=0 // pred_check_branch
    %20 = sbr.rel (0) target = $region21
  $region20: #{mlp_forward.1} parent=0 // pred_region
    _
  $region21: #{mlp_forward.1} parent=0 // pred_fallthru
    _
  // Predicated region
  $region22: #{mlp_forward.1} parent=0 // pred_check
    _
  $region23: #{mlp_forward.1} parent=0 // pred_check_branch
    %22 = sbr.rel (0) target = $region25
  $region24: #{mlp_forward.1} parent=0 // pred_region
    _
  $region25: #{mlp_forward.1} parent=0 // pred_fallthru
    _
  %p24 = scmp.eq.s32.totalorder 0, 0
  // Predicated region
  $region26: #{mlp_forward.1} parent=0 // pred_check
    %p25 = pneg %p24
  $region27: #{mlp_forward.1} parent=0 // pred_check_branch
    %27 = sbr.rel (%p25) target = $region29
  $region28: #{mlp_forward.1} parent=0 // pred_region
    %28 = vst [vmem:[#allocation3] sm:$0x1] 0.0
    %29 = vst [vmem:[#allocation4] sm:$0x1] 0.0
  $region29: #{mlp_forward.1} parent=0 // pred_fallthru
    _
  %v30 = vld [vmem:[%s0] sm:$0xf]
  %v31 = vld [vmem:[%s0 + $0x4] sm:$0xf]
  %v32 = vld [vmem:[%s0 + $0x8] sm:$0xf]
  %v33 = vld [vmem:[%s0 + $0xc] sm:$0xf]
  %v34 = vld [vmem:[%s0 + $0x10] sm:$0xf]
  %v35 = vld [vmem:[%s0 + $0x14] sm:$0xf]
  %v36 = vld [vmem:[%s0 + $0x18] sm:$0xf]
  %v37 = vld [vmem:[%s0 + $0x1c] sm:$0xf]
  %v38 = vld [vmem:[%s0 + $0x20] sm:$0xf]
  %v39 = vld [vmem:[%s0 + $0x24] sm:$0xf]
  %v40 = vld [vmem:[%s0 + $0x28] sm:$0xf]
  %v41 = vld [vmem:[%s0 + $0x2c] sm:$0xf]
  %v42 = vld [vmem:[%s1] sm:$0xf]
  %v43 = vld [vmem:[%s1 + $0x4] sm:$0xf]
  %v44 = vld [vmem:[%s1 + $0x8] sm:$0xf]
  %v45 = vld [vmem:[%s1 + $0xc] sm:$0xf]
  %v46 = vld [vmem:[%s1 + $0x10] sm:$0xf]
  %v47 = vld [vmem:[%s1 + $0x14] sm:$0xf]
  %v48 = vld [vmem:[%s1 + $0x18] sm:$0xf]
  %v49 = vld [vmem:[%s1 + $0x1c] sm:$0xf]
  %v50 = vld [vmem:[%s1 + $0x20] sm:$0xf]
  %v51 = vld [vmem:[%s1 + $0x24] sm:$0xf]
  %v52 = vld [vmem:[%s1 + $0x28] sm:$0xf]
  %v53 = vld [vmem:[%s1 + $0x2c] sm:$0xf]
  %v54 = vld [vmem:[%s1 + $0x30] sm:$0xf]
  %v55 = vld [vmem:[%s1 + $0x34] sm:$0xf]
  %v56 = vld [vmem:[%s1 + $0x38] sm:$0xf]
  %v57 = vld [vmem:[%s1 + $0x3c] sm:$0xf]
  %v70 = vunpack.c.l.b16 %v30
  %v71 = vunpack.c.l.b16 %v31
  %v72 = vunpack.c.l.b16 %v32
  %v73 = vunpack.c.l.b16 %v33
  %v74 = vunpack.c.l.b16 %v34
  %v75 = vunpack.c.l.b16 %v35
  %v76 = vunpack.c.l.b16 %v36
  %v77 = vunpack.c.l.b16 %v37
  %v78 = vunpack.c.l.b16 %v38
  %v79 = vunpack.c.l.b16 %v39
  %v80 = vunpack.c.l.b16 %v40
  %v81 = vunpack.c.l.b16 %v41
  %v82 = vpack.c.b16 %v71, %v70
  %v83 = vpack.c.b16 %v73, %v72
  %v84 = vpack.c.b16 %v75, %v74
  %v85 = vpack.c.b16 %v77, %v76
  %v86 = vpack.c.b16 %v79, %v78
  %v87 = vpack.c.b16 %v81, %v80
  %v110 = vunpack.c.l.b16 %v42
  %v111 = vunpack.c.l.b16 %v43
  %v112 = vunpack.c.l.b16 %v44
  %v113 = vunpack.c.l.b16 %v45
  %v114 = vunpack.c.l.b16 %v46
  %v115 = vunpack.c.l.b16 %v47
  %v116 = vunpack.c.l.b16 %v48
  %v117 = vunpack.c.l.b16 %v49
  %v118 = vunpack.c.l.b16 %v50
  %v119 = vunpack.c.l.b16 %v51
  %v120 = vunpack.c.l.b16 %v52
  %v121 = vunpack.c.l.b16 %v53
  %v122 = vunpack.c.l.b16 %v54
  %v123 = vunpack.c.l.b16 %v55
  %v124 = vunpack.c.l.b16 %v56
  %v125 = vunpack.c.l.b16 %v57
  %v126 = vpack.c.b16 %v111, %v110
  %v127 = vpack.c.b16 %v113, %v112
  %v128 = vpack.c.b16 %v115, %v114
  %v129 = vpack.c.b16 %v117, %v116
  %v130 = vpack.c.b16 %v119, %v118
  %v131 = vpack.c.b16 %v121, %v120
  %v132 = vpack.c.b16 %v123, %v122
  %v133 = vpack.c.b16 %v125, %v124
  %142 = vmatprep.subr.bf16.mxu0 0
  %143 = vmatpush1.bf16.msra.mxu0 %v126
  %144 = vmatprep.subr.bf16.mxu0 0
  %145 = vmatpush1.bf16.msra.mxu0 %v127
  %146 = vmatprep.subr.bf16.mxu0 0
  %147 = vmatpush1.bf16.msra.mxu0 %v128
  %148 = vmatprep.subr.bf16.mxu0 0
  %149 = vmatpush1.bf16.msra.mxu0 %v129
  %150 = vmatprep.subr.bf16.mxu0 0
  %151 = vmatpush1.bf16.msra.mxu0 %v130
  %152 = vmatprep.subr.bf16.mxu0 0
  %153 = vmatpush1.bf16.msra.mxu0 %v131
  %154 = vmatprep.subr.bf16.mxu0 0
  %155 = vmatpush1.bf16.msra.mxu0 %v132
  %156 = vmatprep.subr.bf16.mxu0 0
  %157 = vmatpush1.bf16.msra.mxu0 %v133
  %158 = vmatprep.subr.bf16.mxu0 0
  %159 = vmatpush1.bf16.msra.mxu0 0
  %160 = vmatprep.subr.bf16.mxu0 0
  %161 = vmatpush1.bf16.msra.mxu0 0
  %162 = vmatprep.subr.bf16.mxu0 0
  %163 = vmatpush1.bf16.msra.mxu0 0
  %164 = vmatprep.subr.bf16.mxu0 0
  %165 = vmatpush1.bf16.msra.mxu0 0
  %166 = vmatprep.subr.bf16.mxu0 0
  %167 = vmatpush1.bf16.msra.mxu0 0
  %168 = vmatprep.subr.bf16.mxu0 0
  %169 = vmatpush1.bf16.msra.mxu0 0
  %170 = vmatprep.subr.bf16.mxu0 0
  %171 = vmatpush1.bf16.msra.mxu0 0
  %172 = vmatprep.subr.bf16.mxu0 0
  %173 = vmatpush1.bf16.msra.mxu0 0
  %174 = vmatprep.mubr.bf16.mxu0 0
  %175 = vmatmul.mubr.bf16.gmra.mrb[0].mxu0 %v82
  %v176 = vpop.f32.mrb[0].mxu0
  %v177 = vadd.f32 0.0, %v176
  %v178 = vpop.f32.mrb[0].mxu0
  %v179 = vpop.f32.mrb[0].mxu0
  %v180 = vadd.f32 0.0, %v179
  %v181 = vpop.f32.mrb[0].mxu0
  %182 = vmatprep.mubr.bf16.mxu0 0
  %183 = vmatmul.mubr.bf16.gmra.mrb[0].mxu0 %v83
  %v184 = vpop.f32.mrb[0].mxu0
  %v185 = vadd.f32 0.0, %v184
  %v186 = vpop.f32.mrb[0].mxu0
  %v187 = vpop.f32.mrb[0].mxu0
  %v188 = vadd.f32 0.0, %v187
  %v189 = vpop.f32.mrb[0].mxu0
  %190 = vmatprep.mubr.bf16.mxu0 0
  %191 = vmatmul.mubr.bf16.gmra.mrb[0].mxu0 %v84
  %v192 = vpop.f32.mrb[0].mxu0
  %v193 = vadd.f32 0.0, %v192
  %v194 = vpop.f32.mrb[0].mxu0
  %v195 = vpop.f32.mrb[0].mxu0
  %v196 = vadd.f32 0.0, %v195
  %v197 = vpop.f32.mrb[0].mxu0
  %198 = vmatprep.mubr.bf16.mxu0 0
  %199 = vmatmul.mubr.bf16.gmra.mrb[0].mxu0 %v85
  %v200 = vpop.f32.mrb[0].mxu0
  %v201 = vadd.f32 0.0, %v200
  %v202 = vpop.f32.mrb[0].mxu0
  %v203 = vpop.f32.mrb[0].mxu0
  %v204 = vadd.f32 0.0, %v203
  %v205 = vpop.f32.mrb[0].mxu0
  %206 = vmatprep.mubr.bf16.mxu0 0
  %207 = vmatmul.mubr.bf16.gmra.mrb[0].mxu0 %v86
  %v208 = vpop.f32.mrb[0].mxu0
  %v209 = vadd.f32 0.0, %v208
  %v210 = vpop.f32.mrb[0].mxu0
  %v211 = vpop.f32.mrb[0].mxu0
  %v212 = vadd.f32 0.0, %v211
  %v213 = vpop.f32.mrb[0].mxu0
  %214 = vmatprep.mubr.bf16.mxu0 0
  %215 = vmatmul.mubr.bf16.gmra.mrb[0].mxu0 %v87
  %v216 = vpop.f32.mrb[0].mxu0
  %v217 = vadd.f32 0.0, %v216
  %v218 = vpop.f32.mrb[0].mxu0
  %v219 = vpop.f32.mrb[0].mxu0
  %v220 = vadd.f32 0.0, %v219
  %v221 = vpop.f32.mrb[0].mxu0
  %222 = vdwg.mxu0
  %v223 = vld [vmem:[#allocation3] sm:$0x1]
  %v224 = vadd.f32 %v177, %v180
  %v225 = vadd.f32 %v224, %v185
  %v226 = vadd.f32 %v225, %v188
  %v227 = vadd.f32 %v226, %v193
  %v228 = vadd.f32 %v227, %v196
  %v229 = vadd.f32 %v228, %v201
  %v230 = vadd.f32 %v229, %v204
  %v231 = vadd.f32 %v230, %v209
  %v232 = vadd.f32 %v231, %v212
  %v233 = vadd.f32 %v232, %v217
  %v234 = vadd.f32 %v233, %v220
  %v235 = vrot.slane %v234, 4
  %v236 = vadd.f32 %v234, %v235
  %v237 = vrot.slane %v236, 2
  %v238 = vadd.f32 %v236, %v237
  %v239 = vrot.slane %v238, 1
  %v240 = vadd.f32 %v238, %v239
  %v241 = vadd.f32 %v223, %v240
  %242 = vst [vmem:[#allocation3] sm:$0x1] %v241
  %v243 = vld [vmem:[#allocation4] sm:$0x1]
  %v244 = vmul.f32 %v177, %v177
  %v245 = vmul.f32 %v180, %v180
  %v246 = vmul.f32 %v185, %v185
  %v247 = vmul.f32 %v188, %v188
  %v248 = vmul.f32 %v193, %v193
  %v249 = vmul.f32 %v196, %v196
  %v250 = vmul.f32 %v201, %v201
  %v251 = vmul.f32 %v204, %v204
  %v252 = vmul.f32 %v209, %v209
  %v253 = vmul.f32 %v212, %v212
  %v254 = vmul.f32 %v217, %v217
  %v255 = vmul.f32 %v220, %v220
  %v256 = vadd.f32 %v244, %v245
  %v257 = vadd.f32 %v256, %v246
  %v258 = vadd.f32 %v257, %v247
  %v259 = vadd.f32 %v258, %v248
  %v260 = vadd.f32 %v259, %v249
  %v261 = vadd.f32 %v260, %v250
  %v262 = vadd.f32 %v261, %v251
  %v263 = vadd.f32 %v262, %v252
  %v264 = vadd.f32 %v263, %v253
  %v265 = vadd.f32 %v264, %v254
  %v266 = vadd.f32 %v265, %v255
  %v267 = vrot.slane %v266, 4
  %v268 = vadd.f32 %v266, %v267
  %v269 = vrot.slane %v268, 2
  %v270 = vadd.f32 %v268, %v269
  %v271 = vrot.slane %v270, 1
  %v272 = vadd.f32 %v270, %v271
  %v273 = vadd.f32 %v243, %v272
  %274 = vst [vmem:[#allocation4] sm:$0x1] %v273
  %s275 = smul.u32 0, 96
  %s276 = scalar_lea.vmem [#allocation2], %s275
  %277 = vst [vmem:[%s276] sm:$0xff] %v177
  %278 = vst [vmem:[%s276 + $0x8] sm:$0xff] %v180
  %279 = vst [vmem:[%s276 + $0x10] sm:$0xff] %v185
  %280 = vst [vmem:[%s276 + $0x18] sm:$0xff] %v188
  %281 = vst [vmem:[%s276 + $0x20] sm:$0xff] %v193
  %282 = vst [vmem:[%s276 + $0x28] sm:$0xff] %v196
  %283 = vst [vmem:[%s276 + $0x30] sm:$0xff] %v201
  %284 = vst [vmem:[%s276 + $0x38] sm:$0xff] %v204
  %285 = vst [vmem:[%s276 + $0x40] sm:$0xff] %v209
  %286 = vst [vmem:[%s276 + $0x48] sm:$0xff] %v212
  %287 = vst [vmem:[%s276 + $0x50] sm:$0xff] %v217
  %288 = vst [vmem:[%s276 + $0x58] sm:$0xff] %v220
  // Predicated region
  $region30: #{mlp_forward.1} parent=0 // pred_check
    %p289 = pneg %p24
  $region31: #{mlp_forward.1} parent=0 // pred_check_branch
    %291 = sbr.rel (%p289) target = $region33
  $region32: #{mlp_forward.1} parent=0 // pred_region
    %v292 = vld [vmem:[#allocation3] sm:$0x1]
    %v293 = vmul.f32 %v292, 0.011111111
    %v294 = vld [vmem:[#allocation4] sm:$0x1]
    %v295 = vmul.f32 %v294, 0.011111111
    %v296 = vmul.f32 %v293, %v293
    %v297 = vsub.f32 %v295, %v296
    %v298 = vld [vmem:[%s2] sm:$0x1]
    %v299 = vadd.f32 %v297, 1e-05
    %v300 = vrsqrt.pop %v299
    %v301 = vmul.f32 %v298, %v300
    %v302 = vld [vmem:[%s3] sm:$0x1]
    %v303 = vmul.f32 %v293, %v301
    %v304 = vsub.f32 %v302, %v303
    %v305 = vld [vmem:[#allocation2] sm:$0xff]
    %v306 = vld [vmem:[#allocation2 + $0x8] sm:$0xff]
    %v307 = vld [vmem:[#allocation2 + $0x10] sm:$0xff]
    %v308 = vld [vmem:[#allocation2 + $0x18] sm:$0xff]
    %v309 = vld [vmem:[#allocation2 + $0x20] sm:$0xff]
    %v310 = vld [vmem:[#allocation2 + $0x28] sm:$0xff]
    %v311 = vld [vmem:[#allocation2 + $0x30] sm:$0xff]
    %v312 = vld [vmem:[#allocation2 + $0x38] sm:$0xff]
    %v313 = vld [vmem:[#allocation2 + $0x40] sm:$0xff]
    %v314 = vld [vmem:[#allocation2 + $0x48] sm:$0xff]
    %v315 = vld [vmem:[#allocation2 + $0x50] sm:$0xff]
    %v316 = vld [vmem:[#allocation2 + $0x58] sm:$0xff]
    %v318 = vlaneseq
    %v319 = vshrl.u32 %v318, 7
    %v320 = vsub.s32 0, %v319
    %v321 = vrot.slane %v301, %v320
    %v323 = vmul.f32 %v305, %v321
    %v324 = vmul.f32 %v306, %v321
    %v325 = vmul.f32 %v307, %v321
    %v326 = vmul.f32 %v308, %v321
    %v327 = vmul.f32 %v309, %v321
    %v328 = vmul.f32 %v310, %v321
    %v329 = vmul.f32 %v311, %v321
    %v330 = vmul.f32 %v312, %v321
    %v331 = vmul.f32 %v313, %v321
    %v332 = vmul.f32 %v314, %v321
    %v333 = vmul.f32 %v315, %v321
    %v334 = vmul.f32 %v316, %v321
    %v336 = vlaneseq
    %v337 = vshrl.u32 %v336, 7
    %v338 = vsub.s32 0, %v337
    %v339 = vrot.slane %v304, %v338
    %v341 = vadd.f32 %v323, %v339
    %v342 = vadd.f32 %v324, %v339
    %v343 = vadd.f32 %v325, %v339
    %v344 = vadd.f32 %v326, %v339
    %v345 = vadd.f32 %v327, %v339
    %v346 = vadd.f32 %v328, %v339
    %v347 = vadd.f32 %v329, %v339
    %v348 = vadd.f32 %v330, %v339
    %v349 = vadd.f32 %v331, %v339
    %v350 = vadd.f32 %v332, %v339
    %v351 = vadd.f32 %v333, %v339
    %v352 = vadd.f32 %v334, %v339
    %v353 = vmax.f32 %v341, 0.0
    %v354 = vmax.f32 %v342, 0.0
    %v355 = vmax.f32 %v343, 0.0
    %v356 = vmax.f32 %v344, 0.0
    %v357 = vmax.f32 %v345, 0.0
    %v358 = vmax.f32 %v346, 0.0
    %v359 = vmax.f32 %v347, 0.0
    %v360 = vmax.f32 %v348, 0.0
    %v361 = vmax.f32 %v349, 0.0
    %v362 = vmax.f32 %v350, 0.0
    %v363 = vmax.f32 %v351, 0.0
    %v364 = vmax.f32 %v352, 0.0
    %v365 = vpack.c.bf16 %v354, %v353
    %v366 = vpack.c.bf16 %v356, %v355
    %v367 = vpack.c.bf16 %v358, %v357
    %v368 = vpack.c.bf16 %v360, %v359
    %v369 = vpack.c.bf16 %v362, %v361
    %v370 = vpack.c.bf16 %v364, %v363
    %v371 = vld [vmem:[%s4] sm:$0xf]
    %v372 = vld [vmem:[%s4 + $0x4] sm:$0xf]
    %v373 = vld [vmem:[%s4 + $0x8] sm:$0xf]
    %v374 = vld [vmem:[%s4 + $0xc] sm:$0xf]
    %v375 = vld [vmem:[%s4 + $0x10] sm:$0xf]
    %v376 = vld [vmem:[%s4 + $0x14] sm:$0xf]
    %v377 = vld [vmem:[%s4 + $0x18] sm:$0xf]
    %v378 = vld [vmem:[%s4 + $0x1c] sm:$0xf]
    %v379 = vld [vmem:[%s4 + $0x20] sm:$0xf]
    %v380 = vld [vmem:[%s4 + $0x24] sm:$0xf]
    %v381 = vld [vmem:[%s4 + $0x28] sm:$0xf]
    %v382 = vld [vmem:[%s4 + $0x2c] sm:$0xf]
    %v383 = vld [vmem:[%s4 + $0x30] sm:$0xf]
    %v384 = vld [vmem:[%s4 + $0x34] sm:$0xf]
    %v385 = vld [vmem:[%s4 + $0x38] sm:$0xf]
    %v386 = vld [vmem:[%s4 + $0x3c] sm:$0xf]
    %v387 = vld [vmem:[%s5] sm:$0x1]
    %v389 = vlaneseq
    %v390 = vshrl.u32 %v389, 7
    %v391 = vsub.s32 0, %v390
    %v392 = vrot.slane %v387, %v391
    %v410 = vunpack.c.l.b16 %v371
    %v411 = vunpack.c.l.b16 %v372
    %v412 = vunpack.c.l.b16 %v373
    %v413 = vunpack.c.l.b16 %v374
    %v414 = vunpack.c.l.b16 %v375
    %v415 = vunpack.c.l.b16 %v376
    %v416 = vunpack.c.l.b16 %v377
    %v417 = vunpack.c.l.b16 %v378
    %v418 = vunpack.c.l.b16 %v379
    %v419 = vunpack.c.l.b16 %v380
    %v420 = vunpack.c.l.b16 %v381
    %v421 = vunpack.c.l.b16 %v382
    %v422 = vunpack.c.l.b16 %v383
    %v423 = vunpack.c.l.b16 %v384
    %v424 = vunpack.c.l.b16 %v385
    %v425 = vunpack.c.l.b16 %v386
    %v426 = vpack.c.b16 %v411, %v410
    %v427 = vpack.c.b16 %v413, %v412
    %v428 = vpack.c.b16 %v415, %v414
    %v429 = vpack.c.b16 %v417, %v416
    %v430 = vpack.c.b16 %v419, %v418
    %v431 = vpack.c.b16 %v421, %v420
    %v432 = vpack.c.b16 %v423, %v422
    %v433 = vpack.c.b16 %v425, %v424
    %442 = vmatprep.subr.bf16.mxu0 0
    %443 = vmatpush1.bf16.msra.mxu0 %v426
    %444 = vmatprep.subr.bf16.mxu0 0
    %445 = vmatpush1.bf16.msra.mxu0 %v427
    %446 = vmatprep.subr.bf16.mxu0 0
    %447 = vmatpush1.bf16.msra.mxu0 %v428
    %448 = vmatprep.subr.bf16.mxu0 0
    %449 = vmatpush1.bf16.msra.mxu0 %v429
    %450 = vmatprep.subr.bf16.mxu0 0
    %451 = vmatpush1.bf16.msra.mxu0 %v430
    %452 = vmatprep.subr.bf16.mxu0 0
    %453 = vmatpush1.bf16.msra.mxu0 %v431
    %454 = vmatprep.subr.bf16.mxu0 0
    %455 = vmatpush1.bf16.msra.mxu0 %v432
    %456 = vmatprep.subr.bf16.mxu0 0
    %457 = vmatpush1.bf16.msra.mxu0 %v433
    %458 = vmatprep.subr.bf16.mxu0 0
    %459 = vmatpush1.bf16.msra.mxu0 0
    %460 = vmatprep.subr.bf16.mxu0 0
    %461 = vmatpush1.bf16.msra.mxu0 0
    %462 = vmatprep.subr.bf16.mxu0 0
    %463 = vmatpush1.bf16.msra.mxu0 0
    %464 = vmatprep.subr.bf16.mxu0 0
    %465 = vmatpush1.bf16.msra.mxu0 0
    %466 = vmatprep.subr.bf16.mxu0 0
    %467 = vmatpush1.bf16.msra.mxu0 0
    %468 = vmatprep.subr.bf16.mxu0 0
    %469 = vmatpush1.bf16.msra.mxu0 0
    %470 = vmatprep.subr.bf16.mxu0 0
    %471 = vmatpush1.bf16.msra.mxu0 0
    %472 = vmatprep.subr.bf16.mxu0 0
    %473 = vmatpush1.bf16.msra.mxu0 0
    %474 = vmatprep.mubr.bf16.mxu0 0
    %475 = vmatmul.mubr.bf16.gmra.mrb[0].mxu0 %v365
    %v476 = vpop.f32.mrb[0].mxu0
    %v477 = vadd.f32 %v392, %v476
    %v478 = vpop.f32.mrb[0].mxu0
    %v479 = vpop.f32.mrb[0].mxu0
    %v480 = vadd.f32 %v392, %v479
    %v481 = vpop.f32.mrb[0].mxu0
    %482 = vmatprep.mubr.bf16.mxu0 0
    %483 = vmatmul.mubr.bf16.gmra.mrb[0].mxu0 %v366
    %v484 = vpop.f32.mrb[0].mxu0
    %v485 = vadd.f32 %v392, %v484
    %v486 = vpop.f32.mrb[0].mxu0
    %v487 = vpop.f32.mrb[0].mxu0
    %v488 = vadd.f32 %v392, %v487
    %v489 = vpop.f32.mrb[0].mxu0
    %490 = vmatprep.mubr.bf16.mxu0 0
    %491 = vmatmul.mubr.bf16.gmra.mrb[0].mxu0 %v367
    %v492 = vpop.f32.mrb[0].mxu0
    %v493 = vadd.f32 %v392, %v492
    %v494 = vpop.f32.mrb[0].mxu0
    %v495 = vpop.f32.mrb[0].mxu0
    %v496 = vadd.f32 %v392, %v495
    %v497 = vpop.f32.mrb[0].mxu0
    %498 = vmatprep.mubr.bf16.mxu0 0
    %499 = vmatmul.mubr.bf16.gmra.mrb[0].mxu0 %v368
    %v500 = vpop.f32.mrb[0].mxu0
    %v501 = vadd.f32 %v392, %v500
    %v502 = vpop.f32.mrb[0].mxu0
    %v503 = vpop.f32.mrb[0].mxu0
    %v504 = vadd.f32 %v392, %v503
    %v505 = vpop.f32.mrb[0].mxu0
    %506 = vmatprep.mubr.bf16.mxu0 0
    %507 = vmatmul.mubr.bf16.gmra.mrb[0].mxu0 %v369
    %v508 = vpop.f32.mrb[0].mxu0
    %v509 = vadd.f32 %v392, %v508
    %v510 = vpop.f32.mrb[0].mxu0
    %v511 = vpop.f32.mrb[0].mxu0
    %v512 = vadd.f32 %v392, %v511
    %v513 = vpop.f32.mrb[0].mxu0
    %514 = vmatprep.mubr.bf16.mxu0 0
    %515 = vmatmul.mubr.bf16.gmra.mrb[0].mxu0 %v370
    %v516 = vpop.f32.mrb[0].mxu0
    %v517 = vadd.f32 %v392, %v516
    %v518 = vpop.f32.mrb[0].mxu0
    %v519 = vpop.f32.mrb[0].mxu0
    %v520 = vadd.f32 %v392, %v519
    %v521 = vpop.f32.mrb[0].mxu0
    %522 = vdwg.mxu0
    %523 = vst [vmem:[%s6] sm:$0xff] %v477
    %524 = vst [vmem:[%s6 + $0x8] sm:$0xff] %v480
    %525 = vst [vmem:[%s6 + $0x10] sm:$0xff] %v485
    %526 = vst [vmem:[%s6 + $0x18] sm:$0xff] %v488
    %527 = vst [vmem:[%s6 + $0x20] sm:$0xff] %v493
    %528 = vst [vmem:[%s6 + $0x28] sm:$0xff] %v496
    %529 = vst [vmem:[%s6 + $0x30] sm:$0xff] %v501
    %530 = vst [vmem:[%s6 + $0x38] sm:$0xff] %v504
    %531 = vst [vmem:[%s6 + $0x40] sm:$0xff] %v509
    %532 = vst [vmem:[%s6 + $0x48] sm:$0xff] %v512
    %533 = vst [vmem:[%s6 + $0x50] sm:$0xff] %v517
    %534 = vst [vmem:[%s6 + $0x58] sm:$0xff] %v520
  $region33: #{mlp_forward.1} parent=0 // pred_fallthru
    _
  // Predicated region
  $region34: #{mlp_forward.1} parent=0 // pred_check
    _
  $region35: #{mlp_forward.1} parent=0 // pred_check_branch
    %536 = sbr.rel (0) target = $region37
  $region36: #{mlp_forward.1} parent=0 // pred_region
    _
  $region37: #{mlp_forward.1} parent=0 // pred_fallthru
    _
  // Predicated region
  $region38: #{mlp_forward.1} parent=0 // pred_check
    _
  $region39: #{mlp_forward.1} parent=0 // pred_check_branch
    %538 = sbr.rel (0) target = $region41
  $region40: #{mlp_forward.1} parent=0 // pred_region
    _
  $region41: #{mlp_forward.1} parent=0 // pred_fallthru
    _

</llo_original>
